<compile_context>
chip_gen: v6e
topology: v6e:2x2x1
jax: 0.10.0
libtpu: 0.0.40
codegen_flags: <defaults>
</compile_context>

<pallas_src>
import functools

import jax
import jax.numpy as jnp
from jax.experimental import pallas as pl
from jax.experimental.pallas import tpu as pltpu

IN_DIM = 28 * 28          # 784
HID_DIM = 100
OUT_DIM = 10
PAD = 128                 # lane-padded hidden/output width


def mlp_mnist_kernel(x_ref, w1_ref, b1_ref, w2_ref, b2_ref, w3_ref, b3_ref,
                     o_ref):
    # x arrives as f32 straight from HBM; bf16 cast happens here on the VPU
    # (free — the kernel is HBM-bandwidth bound, VALU has huge slack).
    x = x_ref[...].astype(jnp.bfloat16)                             # [tb, 784]
    # fc1 + relu1 (MXU bf16 inputs, f32 accumulation, f32 epilogue)
    h1 = jnp.dot(x, w1_ref[...], preferred_element_type=jnp.float32)
    h1 = jnp.maximum(h1 + b1_ref[...], 0.0)                         # [tb, 128] f32
    # fc2 + relu2
    h2 = jnp.dot(h1.astype(jnp.bfloat16), w2_ref[...],
                 preferred_element_type=jnp.float32)
    h2 = jnp.maximum(h2 + b2_ref[...], 0.0)                         # [tb, 128] f32
    # fc3 (logits, no activation); store bf16 to halve writeback traffic
    h3 = jnp.dot(h2.astype(jnp.bfloat16), w3_ref[...],
                 preferred_element_type=jnp.float32)
    o_ref[...] = (h3 + b3_ref[...]).astype(o_ref.dtype)             # [tb, 128] bf16


def prepare_params(params):
    """One-time glue: transpose to [in, out], zero-pad features to 128 lanes,
    cast weights to bf16 (biases stay f32).  Done OUTSIDE the per-step path."""
    def prep(w, b, in_pad, out_pad):
        wt = jnp.zeros((in_pad, out_pad), jnp.float32)
        wt = wt.at[: w.shape[1], : w.shape[0]].set(w.T)
        bp = jnp.zeros((1, out_pad), jnp.float32).at[0, : b.shape[0]].set(b)
        return wt.astype(jnp.bfloat16), bp

    w1, b1 = params["fc1"]
    w2, b2 = params["fc2"]
    w3, b3 = params["fc3"]
    w1t, b1p = prep(w1, b1, IN_DIM, PAD)
    w2t, b2p = prep(w2, b2, PAD, PAD)
    w3t, b3p = prep(w3, b3, PAD, PAD)
    return (w1t, b1p, w2t, b2p, w3t, b3p)


def _mlp_call(x_slab, prepared, tb):
    """One pallas_call over x_slab (rows must be a multiple of tb, or tb == rows)."""
    w1t, b1p, w2t, b2p, w3t, b3p = prepared
    n = x_slab.shape[0]
    grid = (n // tb,)
    const = lambda i: (0, 0)          # weights/biases stay resident in VMEM

    flops = 2 * n * (IN_DIM * PAD + 2 * PAD * PAD)
    bytes_accessed = (x_slab.size * 4                                 # f32 x
                      + (w1t.size + w2t.size + w3t.size) * 2          # bf16 W
                      + (b1p.size + b2p.size + b3p.size) * 4          # f32 b
                      + n * PAD * 2)                                  # bf16 out

    return pl.pallas_call(
        mlp_mnist_kernel,
        out_shape=jax.ShapeDtypeStruct((n, PAD), jnp.bfloat16),
        grid=grid,
        in_specs=[
            pl.BlockSpec((tb, IN_DIM), lambda i: (i, 0)),   # x: streamed per tile
            pl.BlockSpec((IN_DIM, PAD), const),             # w1
            pl.BlockSpec((1, PAD), const),                  # b1
            pl.BlockSpec((PAD, PAD), const),                # w2
            pl.BlockSpec((1, PAD), const),                  # b2
            pl.BlockSpec((PAD, PAD), const),                # w3
            pl.BlockSpec((1, PAD), const),                  # b3
        ],
        out_specs=pl.BlockSpec((tb, PAD), lambda i: (i, 0)),
        compiler_params=pltpu.CompilerParams(
            dimension_semantics=("parallel",)),
        cost_estimate=pl.CostEstimate(
            flops=flops, transcendentals=0, bytes_accessed=bytes_accessed),
    )(x_slab, w1t, b1p, w2t, b2p, w3t, b3p)


@functools.partial(jax.jit, static_argnames=("tile_b",))
def mlp_mnist_forward(x, prepared, tile_b=1024):
    """x: [B, 784] float32.  Returns [B, 10] float32 logits."""
    B = x.shape[0]

    # Tile selection: default 1024 (multiple of 256); for B >= 512 cap at
    # round_down(B/2, 256) so the grid has >= 2 steps (feeds both v7x TCs).
    tb = tile_b
    if B >= 512:
        half = max((B // 512) * 256, 256)   # == round_down(B // 2, 256)
        tb = min(tb, half)

    if tb >= B:
        # Single call covering the whole batch (full-extent block, any B legal).
        out = _mlp_call(x, prepared, B)
    else:
        n_main = (B // tb) * tb
        out = _mlp_call(x[:n_main], prepared, tb)
        tail = B - n_main
        if tail:
            # Small full-extent tail call — avoids padding/copying the whole x.
            out_tail = _mlp_call(x[n_main:], prepared, tail)
            out = jnp.concatenate([out, out_tail], axis=0)

    return out[:, :OUT_DIM].astype(jnp.float32)


def init_params(key):
    """nn.Linear default init: uniform(-1/sqrt(fan_in), 1/sqrt(fan_in)); W is [out, in]."""
    dims = [("fc1", IN_DIM, HID_DIM), ("fc2", HID_DIM, HID_DIM),
            ("fc3", HID_DIM, OUT_DIM)]
    params = {}
    for name, fan_in, fan_out in dims:
        key, kw, kb = jax.random.split(key, 3)
        bound = 1.0 / (fan_in ** 0.5)
        w = jax.random.uniform(kw, (fan_out, fan_in), jnp.float32,
                               minval=-bound, maxval=bound)
        b = jax.random.uniform(kb, (fan_out,), jnp.float32,
                               minval=-bound, maxval=bound)
        params[name] = (w, b)
    return params


def reference_forward_f32(x, params):
    h = x
    for name, act in (("fc1", True), ("fc2", True), ("fc3", False)):
        w, b = params[name]
        h = h @ w.T + b
        if act:
            h = jnp.maximum(h, 0.0)
    return h


def reference_forward_bf16(x, params):
    """Same op/precision sequence as the kernel: bf16 MXU inputs, f32 accumulation,
    bf16 logits store."""
    h = x.astype(jnp.bfloat16)
    for name, act in (("fc1", True), ("fc2", True), ("fc3", False)):
        w, b = params[name]
        h = jnp.dot(h, w.T.astype(jnp.bfloat16),
                    preferred_element_type=jnp.float32) + b
        if act:
            h = jnp.maximum(h, 0.0).astype(jnp.bfloat16)
    return h.astype(jnp.bfloat16).astype(jnp.float32)


def _check(x, params, prepared):
    out = jax.block_until_ready(mlp_mnist_forward(x, prepared))
    assert out.shape == (x.shape[0], OUT_DIM)
    # Precision-matched (bf16-MXU, bf16 logits) reference.
    ref_bf16 = reference_forward_bf16(x, params)
    assert jnp.allclose(out, ref_bf16, atol=1e-2, rtol=1e-2), (
        float(jnp.max(jnp.abs(out - ref_bf16))))
    # Loose sanity check against the pure-f32 PyTorch-equivalent forward.
    ref_f32 = reference_forward_f32(x, params)
    assert jnp.allclose(out, ref_f32, atol=1e-1, rtol=1e-1), (
        float(jnp.max(jnp.abs(out - ref_f32))))
    return out


if __name__ == "__main__":
    key = jax.random.PRNGKey(0)
    params = init_params(key)
    prepared = prepare_params(params)

    # Small smoke test (single full-extent call).
    key, kx = jax.random.split(key)
    x_small = jax.random.normal(kx, (8, IN_DIM), jnp.float32)
    _check(x_small, params, prepared)

    # Mid-size batch exercising the 2-step main grid + tail-call path.
    key, kx = jax.random.split(key)
    x_mid = jax.random.normal(kx, (520, IN_DIM), jnp.float32)
    _check(x_mid, params, prepared)

    print("KERNEL_OK")
</pallas_src>

<mosaic_0001>
module attributes {stable_mosaic.version = 11 : i64} {
  func.func @mlp_mnist_kernel(%arg0: i32, %arg1: memref<8x784xf32, #tpu.memory_space<vmem>>, %arg2: memref<784x128xbf16, #tpu.memory_space<vmem>>, %arg3: memref<1x128xf32, #tpu.memory_space<vmem>>, %arg4: memref<128x128xbf16, #tpu.memory_space<vmem>>, %arg5: memref<1x128xf32, #tpu.memory_space<vmem>>, %arg6: memref<128x128xbf16, #tpu.memory_space<vmem>>, %arg7: memref<1x128xf32, #tpu.memory_space<vmem>>, %arg8: memref<8x128xbf16, #tpu.memory_space<vmem>>) attributes {dimension_semantics = [#tpu.dimension_semantics<parallel>], iteration_bounds = array<i64: 1>, scalar_prefetch = 0 : i64, scratch_operands = 0 : i64, tpu.core_type = #tpu.core_type<tc>, window_params = [{transform_indices = @transform_0, window_bounds = array<i64: 8, 784>}, {pipeline_mode = #tpu.pipeline_mode<synchronous>, transform_indices = @transform_1, window_bounds = array<i64: 784, 128>}, {pipeline_mode = #tpu.pipeline_mode<synchronous>, transform_indices = @transform_2, window_bounds = array<i64: 1, 128>}, {pipeline_mode = #tpu.pipeline_mode<synchronous>, transform_indices = @transform_3, window_bounds = array<i64: 128, 128>}, {pipeline_mode = #tpu.pipeline_mode<synchronous>, transform_indices = @transform_4, window_bounds = array<i64: 1, 128>}, {pipeline_mode = #tpu.pipeline_mode<synchronous>, transform_indices = @transform_5, window_bounds = array<i64: 128, 128>}, {pipeline_mode = #tpu.pipeline_mode<synchronous>, transform_indices = @transform_6, window_bounds = array<i64: 1, 128>}, {transform_indices = @transform_7, window_bounds = array<i64: 8, 128>}]} {
    %c0 = arith.constant 0 : index
    %c0_0 = arith.constant 0 : index
    %0 = vector.load %arg1[%c0, %c0_0] : memref<8x784xf32, #tpu.memory_space<vmem>>, vector<8x784xf32>
    %1 = arith.truncf %0 : vector<8x784xf32> to vector<8x784xbf16>
    %c0_1 = arith.constant 0 : index
    %c0_2 = arith.constant 0 : index
    %2 = vector.load %arg2[%c0_1, %c0_2] : memref<784x128xbf16, #tpu.memory_space<vmem>>, vector<784x128xbf16>
    %cst = arith.constant dense<0.000000e+00> : vector<8x128xf32>
    %3 = tpu.matmul %1, %2, %cst {dimension_numbers = #tpu.dot_dimension_numbers<[1], [0], [0], [1], [0, 0, 1, 1], [], []>} : vector<8x784xbf16>, vector<784x128xbf16>, vector<8x128xf32> -> vector<8x128xf32>
    %c0_3 = arith.constant 0 : index
    %c0_4 = arith.constant 0 : index
    %4 = vector.load %arg3[%c0_3, %c0_4] : memref<1x128xf32, #tpu.memory_space<vmem>>, vector<1x128xf32>
    %5 = vector.broadcast %4 : vector<1x128xf32> to vector<8x128xf32>
    %6 = arith.addf %3, %5 : vector<8x128xf32>
    %cst_5 = arith.constant 0.000000e+00 : f32
    %7 = vector.broadcast %cst_5 : f32 to vector<8x128xf32>
    %8 = arith.maximumf %6, %7 : vector<8x128xf32>
    %9 = arith.truncf %8 : vector<8x128xf32> to vector<8x128xbf16>
    %c0_6 = arith.constant 0 : index
    %c0_7 = arith.constant 0 : index
    %10 = vector.load %arg4[%c0_6, %c0_7] : memref<128x128xbf16, #tpu.memory_space<vmem>>, vector<128x128xbf16>
    %cst_8 = arith.constant dense<0.000000e+00> : vector<8x128xf32>
    %11 = tpu.matmul %9, %10, %cst_8 {dimension_numbers = #tpu.dot_dimension_numbers<[1], [0], [0], [1], [0, 0, 1, 1], [], []>} : vector<8x128xbf16>, vector<128x128xbf16>, vector<8x128xf32> -> vector<8x128xf32>
    %c0_9 = arith.constant 0 : index
    %c0_10 = arith.constant 0 : index
    %12 = vector.load %arg5[%c0_9, %c0_10] : memref<1x128xf32, #tpu.memory_space<vmem>>, vector<1x128xf32>
    %13 = vector.broadcast %12 : vector<1x128xf32> to vector<8x128xf32>
    %14 = arith.addf %11, %13 : vector<8x128xf32>
    %cst_11 = arith.constant 0.000000e+00 : f32
    %15 = vector.broadcast %cst_11 : f32 to vector<8x128xf32>
    %16 = arith.maximumf %14, %15 : vector<8x128xf32>
    %17 = arith.truncf %16 : vector<8x128xf32> to vector<8x128xbf16>
    %c0_12 = arith.constant 0 : index
    %c0_13 = arith.constant 0 : index
    %18 = vector.load %arg6[%c0_12, %c0_13] : memref<128x128xbf16, #tpu.memory_space<vmem>>, vector<128x128xbf16>
    %cst_14 = arith.constant dense<0.000000e+00> : vector<8x128xf32>
    %19 = tpu.matmul %17, %18, %cst_14 {dimension_numbers = #tpu.dot_dimension_numbers<[1], [0], [0], [1], [0, 0, 1, 1], [], []>} : vector<8x128xbf16>, vector<128x128xbf16>, vector<8x128xf32> -> vector<8x128xf32>
    %c0_15 = arith.constant 0 : index
    %c0_16 = arith.constant 0 : index
    %20 = vector.load %arg7[%c0_15, %c0_16] : memref<1x128xf32, #tpu.memory_space<vmem>>, vector<1x128xf32>
    %21 = vector.broadcast %20 : vector<1x128xf32> to vector<8x128xf32>
    %22 = arith.addf %19, %21 : vector<8x128xf32>
    %23 = arith.truncf %22 : vector<8x128xf32> to vector<8x128xbf16>
    %c0_17 = arith.constant 0 : index
    %c0_18 = arith.constant 0 : index
    %24 = vector.load %arg8[%c0_17, %c0_18] : memref<8x128xbf16, #tpu.memory_space<vmem>>, vector<8x128xbf16>
    tpu.vector_store %arg8[%c0_17, %c0_18], %23 {strides = array<i32>} : memref<8x128xbf16, #tpu.memory_space<vmem>>, vector<8x128xbf16>,
    return
  }
  func.func @transform_0(%arg0: i32) -> (i32, i32) {
    %c0_i32 = arith.constant 0 : i32
    %c0_i32_0 = arith.constant 0 : i32
    return %arg0, %c0_i32 : i32, i32
  }
  func.func @transform_1(%arg0: i32) -> (i32, i32) {
    %c0_i32 = arith.constant 0 : i32
    %c0_i32_0 = arith.constant 0 : i32
    %c0_i32_1 = arith.constant 0 : i32
    return %c0_i32, %c0_i32_0 : i32, i32
  }
  func.func @transform_2(%arg0: i32) -> (i32, i32) {
    %c0_i32 = arith.constant 0 : i32
    %c0_i32_0 = arith.constant 0 : i32
    %c0_i32_1 = arith.constant 0 : i32
    return %c0_i32, %c0_i32_0 : i32, i32
  }
  func.func @transform_3(%arg0: i32) -> (i32, i32) {
    %c0_i32 = arith.constant 0 : i32
    %c0_i32_0 = arith.constant 0 : i32
    %c0_i32_1 = arith.constant 0 : i32
    return %c0_i32, %c0_i32_0 : i32, i32
  }
  func.func @transform_4(%arg0: i32) -> (i32, i32) {
    %c0_i32 = arith.constant 0 : i32
    %c0_i32_0 = arith.constant 0 : i32
    %c0_i32_1 = arith.constant 0 : i32
    return %c0_i32, %c0_i32_0 : i32, i32
  }
  func.func @transform_5(%arg0: i32) -> (i32, i32) {
    %c0_i32 = arith.constant 0 : i32
    %c0_i32_0 = arith.constant 0 : i32
    %c0_i32_1 = arith.constant 0 : i32
    return %c0_i32, %c0_i32_0 : i32, i32
  }
  func.func @transform_6(%arg0: i32) -> (i32, i32) {
    %c0_i32 = arith.constant 0 : i32
    %c0_i32_0 = arith.constant 0 : i32
    %c0_i32_1 = arith.constant 0 : i32
    return %c0_i32, %c0_i32_0 : i32, i32
  }
  func.func @transform_7(%arg0: i32) -> (i32, i32) {
    %c0_i32 = arith.constant 0 : i32
    %c0_i32_0 = arith.constant 0 : i32
    return %arg0, %c0_i32 : i32, i32
  }
}

</mosaic_0001>

<llo_original>
// kernel: mlp_mnist_forward.1
$region0: #{mlp_mnist_forward.1}
  #allocation0 [shape = 'u32[]', space=smem, size = 0x4, offset = 0x4, fixed_abs, tag = 'smem constant byte address 0x4 - core index']
  #allocation1 [shape = 'u32[144,128]{1,0:T(1,128)}', space=vmem, size = 0x12000, scoped, tag = 'internal scratch']
  %s0 = inlined_call_operand.hbm [shape: f32[8,784], index: 0, kind: input, shape index: {}]
  %s1 = inlined_call_operand.hbm [shape: bf16[784,128], index: 1, kind: input, shape index: {}]
  %s2 = inlined_call_operand.vmem [shape: f32[1,128], index: 2, kind: input, shape index: {}]
  %s3 = inlined_call_operand.hbm [shape: bf16[128,128], index: 3, kind: input, shape index: {}]
  %s4 = inlined_call_operand.vmem [shape: f32[1,128], index: 4, kind: input, shape index: {}]
  %s5 = inlined_call_operand.hbm [shape: bf16[128,128], index: 5, kind: input, shape index: {}]
  %s6 = inlined_call_operand.vmem [shape: f32[1,128], index: 6, kind: input, shape index: {}]
  %s7 = inlined_call_operand.vmem [shape: bf16[8,128], index: 7, kind: output, shape index: {}]
  %s8 = sld [smem:[#allocation0]]
  $region54: #{mlp_mnist_forward.1} parent=0
    _
  %s10 = ssub.s32 1, %s8
  %s11 = scalar_select 0, %s10, %s8
  $region1: #{mlp_mnist_forward.1} parent=0
    #allocation2 [shape = 'u8[28672]{0}', space=vmem, size = 0x7000, scoped, tag = 'input window, operand 0, single buffered']
    #allocation3 [shape = 's32[1]{0}', space=sflag, size = 0x4, scoped, tag = 'scoped memory for mlp_mnist_forward.1']
    #allocation4 [shape = 'u8[200704]{0}', space=vmem, size = 0x31000, scoped, tag = 'input window, operand 1, single buffered']
    #allocation5 [shape = 's32[1]{0}', space=sflag, size = 0x4, scoped, tag = 'scoped memory for mlp_mnist_forward.1']
    #allocation6 [shape = 'u8[32768]{0}', space=vmem, size = 0x8000, scoped, tag = 'input window, operand 3, single buffered']
    #allocation7 [shape = 'u8[32768]{0}', space=vmem, size = 0x8000, scoped, tag = 'input window, operand 5, single buffered']
    #allocation8 [shape = 's32[1]{0}', space=sflag, size = 0x4, scoped, tag = 'scoped memory for mlp_mnist_forward.1']
    %12 = vsyncpa [#allocation3], 0
    %13 = vsyncpa [#allocation5], 0
    %14 = vsyncpa [#allocation8], 0
    // Predicated region
    $region2: #{mlp_mnist_forward.1} parent=1 // pred_check
      _
    $region3: #{mlp_mnist_forward.1} parent=1 // pred_check_branch
      %16 = sbr.rel (0) target = $region5
    $region4: #{mlp_mnist_forward.1} parent=1 // pred_region
      %s18 = ssub.s32 896, 896
      %19 = vsyncadd [#allocation3], %s18
      %s21 = sshll.u32 [#allocation2], 4
      %s22 = int_to_ptr.vmem [resolvable:$true] %s21
      %24 = dma.hbm_to_vmem [thread:$0]  %s0, 896, %s22, [#allocation3]
    $region5: #{mlp_mnist_forward.1} parent=1 // pred_fallthru
      _
    // Predicated region
    $region6: #{mlp_mnist_forward.1} parent=1 // pred_check
      _
    $region7: #{mlp_mnist_forward.1} parent=1 // pred_check_branch
      %26 = sbr.rel (0) target = $region9
    $region8: #{mlp_mnist_forward.1} parent=1 // pred_region
      %s28 = ssub.s32 6272, 6272
      %29 = vsyncadd [#allocation5], %s28
      %s30 = sshll.u32 [#allocation4], 4
      %s31 = int_to_ptr.vmem [resolvable:$true] %s30
      %36 = dma.hbm_to_vmem [thread:$0]  %s1, 6272, %s31, [#allocation5], 64, 64, 4
    $region9: #{mlp_mnist_forward.1} parent=1 // pred_fallthru
      _
    // Predicated region
    $region10: #{mlp_mnist_forward.1} parent=1 // pred_check
      _
    $region11: #{mlp_mnist_forward.1} parent=1 // pred_check_branch
      %38 = sbr.rel (0) target = $region13
    $region12: #{mlp_mnist_forward.1} parent=1 // pred_region
      _
    $region13: #{mlp_mnist_forward.1} parent=1 // pred_fallthru
      _
    // Predicated region
    $region14: #{mlp_mnist_forward.1} parent=1 // pred_check
      _
    $region15: #{mlp_mnist_forward.1} parent=1 // pred_check_branch
      %40 = sbr.rel (0) target = $region17
    $region16: #{mlp_mnist_forward.1} parent=1 // pred_region
      %s42 = ssub.s32 1024, 1024
      %43 = vsyncadd [#allocation5], %s42
      %s44 = sshll.u32 [#allocation6], 4
      %s45 = int_to_ptr.vmem [resolvable:$true] %s44
      %50 = dma.hbm_to_vmem [thread:$0]  %s3, 1024, %s45, [#allocation5], 64, 64, 4
    $region17: #{mlp_mnist_forward.1} parent=1 // pred_fallthru
      _
    // Predicated region
    $region18: #{mlp_mnist_forward.1} parent=1 // pred_check
      _
    $region19: #{mlp_mnist_forward.1} parent=1 // pred_check_branch
      %52 = sbr.rel (0) target = $region21
    $region20: #{mlp_mnist_forward.1} parent=1 // pred_region
      _
    $region21: #{mlp_mnist_forward.1} parent=1 // pred_fallthru
      _
    // Predicated region
    $region22: #{mlp_mnist_forward.1} parent=1 // pred_check
      _
    $region23: #{mlp_mnist_forward.1} parent=1 // pred_check_branch
      %54 = sbr.rel (0) target = $region25
    $region24: #{mlp_mnist_forward.1} parent=1 // pred_region
      %s56 = ssub.s32 1024, 1024
      %57 = vsyncadd [#allocation8], %s56
      %s58 = sshll.u32 [#allocation7], 4
      %s59 = int_to_ptr.vmem [resolvable:$true] %s58
      %64 = dma.hbm_to_vmem [thread:$0]  %s5, 1024, %s59, [#allocation8], 64, 64, 4
    $region25: #{mlp_mnist_forward.1} parent=1 // pred_fallthru
      _
    // Predicated region
    $region26: #{mlp_mnist_forward.1} parent=1 // pred_check
      _
    $region27: #{mlp_mnist_forward.1} parent=1 // pred_check_branch
      %66 = sbr.rel (0) target = $region29
    $region28: #{mlp_mnist_forward.1} parent=1 // pred_region
      _
    $region29: #{mlp_mnist_forward.1} parent=1 // pred_fallthru
      _
    // Predicated region
    $region30: #{mlp_mnist_forward.1} parent=1 // pred_check
      _
    $region31: #{mlp_mnist_forward.1} parent=1 // pred_check_branch
      %68 = sbr.rel (0) target = $region33
    $region32: #{mlp_mnist_forward.1} parent=1 // pred_region
      %69 = dma.done [#allocation3], 896
    $region33: #{mlp_mnist_forward.1} parent=1 // pred_fallthru
      _
    // Predicated region
    $region34: #{mlp_mnist_forward.1} parent=1 // pred_check
      _
    $region35: #{mlp_mnist_forward.1} parent=1 // pred_check_branch
      %71 = sbr.rel (0) target = $region37
    $region36: #{mlp_mnist_forward.1} parent=1 // pred_region
      %72 = dma.done [#allocation5], 6272
    $region37: #{mlp_mnist_forward.1} parent=1 // pred_fallthru
      _
    // Predicated region
    $region38: #{mlp_mnist_forward.1} parent=1 // pred_check
      _
    $region39: #{mlp_mnist_forward.1} parent=1 // pred_check_branch
      %74 = sbr.rel (0) target = $region41
    $region40: #{mlp_mnist_forward.1} parent=1 // pred_region
      %75 = dma.done [#allocation5], 1024
    $region41: #{mlp_mnist_forward.1} parent=1 // pred_fallthru
      _
    // Predicated region
    $region42: #{mlp_mnist_forward.1} parent=1 // pred_check
      _
    $region43: #{mlp_mnist_forward.1} parent=1 // pred_check_branch
      %77 = sbr.rel (0) target = $region45
    $region44: #{mlp_mnist_forward.1} parent=1 // pred_region
      %78 = dma.done [#allocation8], 1024
    $region45: #{mlp_mnist_forward.1} parent=1 // pred_fallthru
      _
    %v80 = vld [vmem:[#allocation2] sm:$0xff]
    %v81 = vld [vmem:[#allocation2 + $0x8] sm:$0xff]
    %v82 = vld [vmem:[#allocation2 + $0x10] sm:$0xff]
    %v83 = vld [vmem:[#allocation2 + $0x18] sm:$0xff]
    %v84 = vld [vmem:[#allocation2 + $0x20] sm:$0xff]
    %v85 = vld [vmem:[#allocation2 + $0x28] sm:$0xff]
    %v86 = vld [vmem:[#allocation2 + $0x30] sm:$0xff]
    %v87 = vpack.c.bf16 %v80, %v80
    %v88 = vpack.c.bf16 %v81, %v81
    %v89 = vpack.c.bf16 %v82, %v82
    %v90 = vpack.c.bf16 %v83, %v83
    %v91 = vpack.c.bf16 %v84, %v84
    %v92 = vpack.c.bf16 %v85, %v85
    %v93 = vpack.c.bf16 %v86, %v86
    %v94 = vld [vmem:[#allocation4] sm:$0xf]
    %v95 = vld [vmem:[#allocation4 + $0x4] sm:$0xf]
    %v96 = vld [vmem:[#allocation4 + $0x8] sm:$0xf]
    %v97 = vld [vmem:[#allocation4 + $0xc] sm:$0xf]
    %v98 = vld [vmem:[#allocation4 + $0x10] sm:$0xf]
    %v99 = vld [vmem:[#allocation4 + $0x14] sm:$0xf]
    %v100 = vld [vmem:[#allocation4 + $0x18] sm:$0xf]
    %v101 = vld [vmem:[#allocation4 + $0x1c] sm:$0xf]
    %v102 = vld [vmem:[#allocation4 + $0x20] sm:$0xf]
    %v103 = vld [vmem:[#allocation4 + $0x24] sm:$0xf]
    %v104 = vld [vmem:[#allocation4 + $0x28] sm:$0xf]
    %v105 = vld [vmem:[#allocation4 + $0x2c] sm:$0xf]
    %v106 = vld [vmem:[#allocation4 + $0x30] sm:$0xf]
    %v107 = vld [vmem:[#allocation4 + $0x34] sm:$0xf]
    %v108 = vld [vmem:[#allocation4 + $0x38] sm:$0xf]
    %v109 = vld [vmem:[#allocation4 + $0x3c] sm:$0xf]
    %v110 = vld [vmem:[#allocation4 + $0x40] sm:$0xf]
    %v111 = vld [vmem:[#allocation4 + $0x44] sm:$0xf]
    %v112 = vld [vmem:[#allocation4 + $0x48] sm:$0xf]
    %v113 = vld [vmem:[#allocation4 + $0x4c] sm:$0xf]
    %v114 = vld [vmem:[#allocation4 + $0x50] sm:$0xf]
    %v115 = vld [vmem:[#allocation4 + $0x54] sm:$0xf]
    %v116 = vld [vmem:[#allocation4 + $0x58] sm:$0xf]
    %v117 = vld [vmem:[#allocation4 + $0x5c] sm:$0xf]
    %v118 = vld [vmem:[#allocation4 + $0x60] sm:$0xf]
    %v119 = vld [vmem:[#allocation4 + $0x64] sm:$0xf]
    %v120 = vld [vmem:[#allocation4 + $0x68] sm:$0xf]
    %v121 = vld [vmem:[#allocation4 + $0x6c] sm:$0xf]
    %v122 = vld [vmem:[#allocation4 + $0x70] sm:$0xf]
    %v123 = vld [vmem:[#allocation4 + $0x74] sm:$0xf]
    %v124 = vld [vmem:[#allocation4 + $0x78] sm:$0xf]
    %v125 = vld [vmem:[#allocation4 + $0x7c] sm:$0xf]
    %v126 = vld [vmem:[#allocation4 + $0x80] sm:$0xf]
    %v127 = vld [vmem:[#allocation4 + $0x84] sm:$0xf]
    %v128 = vld [vmem:[#allocation4 + $0x88] sm:$0xf]
    %v129 = vld [vmem:[#allocation4 + $0x8c] sm:$0xf]
    %v130 = vld [vmem:[#allocation4 + $0x90] sm:$0xf]
    %v131 = vld [vmem:[#allocation4 + $0x94] sm:$0xf]
    %v132 = vld [vmem:[#allocation4 + $0x98] sm:$0xf]
    %v133 = vld [vmem:[#allocation4 + $0x9c] sm:$0xf]
    %v134 = vld [vmem:[#allocation4 + $0xa0] sm:$0xf]
    %v135 = vld [vmem:[#allocation4 + $0xa4] sm:$0xf]
    %v136 = vld [vmem:[#allocation4 + $0xa8] sm:$0xf]
    %v137 = vld [vmem:[#allocation4 + $0xac] sm:$0xf]
    %v138 = vld [vmem:[#allocation4 + $0xb0] sm:$0xf]
    %v139 = vld [vmem:[#allocation4 + $0xb4] sm:$0xf]
    %v140 = vld [vmem:[#allocation4 + $0xb8] sm:$0xf]
    %v141 = vld [vmem:[#allocation4 + $0xbc] sm:$0xf]
    %v142 = vld [vmem:[#allocation4 + $0xc0] sm:$0xf]
    %v143 = vld [vmem:[#allocation4 + $0xc4] sm:$0xf]
    %v144 = vld [vmem:[#allocation4 + $0xc8] sm:$0xf]
    %v145 = vld [vmem:[#allocation4 + $0xcc] sm:$0xf]
    %v146 = vld [vmem:[#allocation4 + $0xd0] sm:$0xf]
    %v147 = vld [vmem:[#allocation4 + $0xd4] sm:$0xf]
    %v148 = vld [vmem:[#allocation4 + $0xd8] sm:$0xf]
    %v149 = vld [vmem:[#allocation4 + $0xdc] sm:$0xf]
    %v150 = vld [vmem:[#allocation4 + $0xe0] sm:$0xf]
    %v151 = vld [vmem:[#allocation4 + $0xe4] sm:$0xf]
    %v152 = vld [vmem:[#allocation4 + $0xe8] sm:$0xf]
    %v153 = vld [vmem:[#allocation4 + $0xec] sm:$0xf]
    %v154 = vld [vmem:[#allocation4 + $0xf0] sm:$0xf]
    %v155 = vld [vmem:[#allocation4 + $0xf4] sm:$0xf]
    %v156 = vld [vmem:[#allocation4 + $0xf8] sm:$0xf]
    %v157 = vld [vmem:[#allocation4 + $0xfc] sm:$0xf]
    %v158 = vld [vmem:[#allocation4 + $0x100] sm:$0xf]
    %v159 = vld [vmem:[#allocation4 + $0x104] sm:$0xf]
    %v160 = vld [vmem:[#allocation4 + $0x108] sm:$0xf]
    %v161 = vld [vmem:[#allocation4 + $0x10c] sm:$0xf]
    %v162 = vld [vmem:[#allocation4 + $0x110] sm:$0xf]
    %v163 = vld [vmem:[#allocation4 + $0x114] sm:$0xf]
    %v164 = vld [vmem:[#allocation4 + $0x118] sm:$0xf]
    %v165 = vld [vmem:[#allocation4 + $0x11c] sm:$0xf]
    %v166 = vld [vmem:[#allocation4 + $0x120] sm:$0xf]
    %v167 = vld [vmem:[#allocation4 + $0x124] sm:$0xf]
    %v168 = vld [vmem:[#allocation4 + $0x128] sm:$0xf]
    %v169 = vld [vmem:[#allocation4 + $0x12c] sm:$0xf]
    %v170 = vld [vmem:[#allocation4 + $0x130] sm:$0xf]
    %v171 = vld [vmem:[#allocation4 + $0x134] sm:$0xf]
    %v172 = vld [vmem:[#allocation4 + $0x138] sm:$0xf]
    %v173 = vld [vmem:[#allocation4 + $0x13c] sm:$0xf]
    %v174 = vld [vmem:[#allocation4 + $0x140] sm:$0xf]
    %v175 = vld [vmem:[#allocation4 + $0x144] sm:$0xf]
    %v176 = vld [vmem:[#allocation4 + $0x148] sm:$0xf]
    %v177 = vld [vmem:[#allocation4 + $0x14c] sm:$0xf]
    %v178 = vld [vmem:[#allocation4 + $0x150] sm:$0xf]
    %v179 = vld [vmem:[#allocation4 + $0x154] sm:$0xf]
    %v180 = vld [vmem:[#allocation4 + $0x158] sm:$0xf]
    %v181 = vld [vmem:[#allocation4 + $0x15c] sm:$0xf]
    %v182 = vld [vmem:[#allocation4 + $0x160] sm:$0xf]
    %v183 = vld [vmem:[#allocation4 + $0x164] sm:$0xf]
    %v184 = vld [vmem:[#allocation4 + $0x168] sm:$0xf]
    %v185 = vld [vmem:[#allocation4 + $0x16c] sm:$0xf]
    %v186 = vld [vmem:[#allocation4 + $0x170] sm:$0xf]
    %v187 = vld [vmem:[#allocation4 + $0x174] sm:$0xf]
    %v188 = vld [vmem:[#allocation4 + $0x178] sm:$0xf]
    %v189 = vld [vmem:[#allocation4 + $0x17c] sm:$0xf]
    %v190 = vld [vmem:[#allocation4 + $0x180] sm:$0xf]
    %v191 = vld [vmem:[#allocation4 + $0x184] sm:$0xf]
    %v192 = vld [vmem:[%s2] sm:$0x1]
    %v194 = vlaneseq
    %v195 = vshrl.u32 %v194, 7
    %v196 = vsub.s32 0, %v195
    %v197 = vrot.slane %v192, %v196
    %v297 = vunpack.c.l.b16 %v94
    %v298 = vunpack.c.l.b16 %v95
    %v299 = vunpack.c.l.b16 %v96
    %v300 = vunpack.c.l.b16 %v97
    %v301 = vunpack.c.l.b16 %v98
    %v302 = vunpack.c.l.b16 %v99
    %v303 = vunpack.c.l.b16 %v100
    %v304 = vunpack.c.l.b16 %v101
    %v305 = vunpack.c.l.b16 %v102
    %v306 = vunpack.c.l.b16 %v103
    %v307 = vunpack.c.l.b16 %v104
    %v308 = vunpack.c.l.b16 %v105
    %v309 = vunpack.c.l.b16 %v106
    %v310 = vunpack.c.l.b16 %v107
    %v311 = vunpack.c.l.b16 %v108
    %v312 = vunpack.c.l.b16 %v109
    %v313 = vunpack.c.l.b16 %v110
    %v314 = vunpack.c.l.b16 %v111
    %v315 = vunpack.c.l.b16 %v112
    %v316 = vunpack.c.l.b16 %v113
    %v317 = vunpack.c.l.b16 %v114
    %v318 = vunpack.c.l.b16 %v115
    %v319 = vunpack.c.l.b16 %v116
    %v320 = vunpack.c.l.b16 %v117
    %v321 = vunpack.c.l.b16 %v118
    %v322 = vunpack.c.l.b16 %v119
    %v323 = vunpack.c.l.b16 %v120
    %v324 = vunpack.c.l.b16 %v121
    %v325 = vunpack.c.l.b16 %v122
    %v326 = vunpack.c.l.b16 %v123
    %v327 = vunpack.c.l.b16 %v124
    %v328 = vunpack.c.l.b16 %v125
    %v329 = vunpack.c.l.b16 %v126
    %v330 = vunpack.c.l.b16 %v127
    %v331 = vunpack.c.l.b16 %v128
    %v332 = vunpack.c.l.b16 %v129
    %v333 = vunpack.c.l.b16 %v130
    %v334 = vunpack.c.l.b16 %v131
    %v335 = vunpack.c.l.b16 %v132
    %v336 = vunpack.c.l.b16 %v133
    %v337 = vunpack.c.l.b16 %v134
    %v338 = vunpack.c.l.b16 %v135
    %v339 = vunpack.c.l.b16 %v136
    %v340 = vunpack.c.l.b16 %v137
    %v341 = vunpack.c.l.b16 %v138
    %v342 = vunpack.c.l.b16 %v139
    %v343 = vunpack.c.l.b16 %v140
    %v344 = vunpack.c.l.b16 %v141
    %v345 = vunpack.c.l.b16 %v142
    %v346 = vunpack.c.l.b16 %v143
    %v347 = vunpack.c.l.b16 %v144
    %v348 = vunpack.c.l.b16 %v145
    %v349 = vunpack.c.l.b16 %v146
    %v350 = vunpack.c.l.b16 %v147
    %v351 = vunpack.c.l.b16 %v148
    %v352 = vunpack.c.l.b16 %v149
    %v353 = vunpack.c.l.b16 %v150
    %v354 = vunpack.c.l.b16 %v151
    %v355 = vunpack.c.l.b16 %v152
    %v356 = vunpack.c.l.b16 %v153
    %v357 = vunpack.c.l.b16 %v154
    %v358 = vunpack.c.l.b16 %v155
    %v359 = vunpack.c.l.b16 %v156
    %v360 = vunpack.c.l.b16 %v157
    %v361 = vunpack.c.l.b16 %v158
    %v362 = vunpack.c.l.b16 %v159
    %v363 = vunpack.c.l.b16 %v160
    %v364 = vunpack.c.l.b16 %v161
    %v365 = vunpack.c.l.b16 %v162
    %v366 = vunpack.c.l.b16 %v163
    %v367 = vunpack.c.l.b16 %v164
    %v368 = vunpack.c.l.b16 %v165
    %v369 = vunpack.c.l.b16 %v166
    %v370 = vunpack.c.l.b16 %v167
    %v371 = vunpack.c.l.b16 %v168
    %v372 = vunpack.c.l.b16 %v169
    %v373 = vunpack.c.l.b16 %v170
    %v374 = vunpack.c.l.b16 %v171
    %v375 = vunpack.c.l.b16 %v172
    %v376 = vunpack.c.l.b16 %v173
    %v377 = vunpack.c.l.b16 %v174
    %v378 = vunpack.c.l.b16 %v175
    %v379 = vunpack.c.l.b16 %v176
    %v380 = vunpack.c.l.b16 %v177
    %v381 = vunpack.c.l.b16 %v178
    %v382 = vunpack.c.l.b16 %v179
    %v383 = vunpack.c.l.b16 %v180
    %v384 = vunpack.c.l.b16 %v181
    %v385 = vunpack.c.l.b16 %v182
    %v386 = vunpack.c.l.b16 %v183
    %v387 = vunpack.c.l.b16 %v184
    %v388 = vunpack.c.l.b16 %v185
    %v389 = vunpack.c.l.b16 %v186
    %v390 = vunpack.c.l.b16 %v187
    %v391 = vunpack.c.l.b16 %v188
    %v392 = vunpack.c.l.b16 %v189
    %v393 = vunpack.c.l.b16 %v190
    %v394 = vunpack.c.l.b16 %v191
    %v395 = vpack.c.b16 %v298, %v297
    %v396 = vpack.c.b16 %v300, %v299
    %v397 = vpack.c.b16 %v302, %v301
    %v398 = vpack.c.b16 %v304, %v303
    %v399 = vpack.c.b16 %v306, %v305
    %v400 = vpack.c.b16 %v308, %v307
    %v401 = vpack.c.b16 %v310, %v309
    %v402 = vpack.c.b16 %v312, %v311
    %v403 = vpack.c.b16 %v314, %v313
    %v404 = vpack.c.b16 %v316, %v315
    %v405 = vpack.c.b16 %v318, %v317
    %v406 = vpack.c.b16 %v320, %v319
    %v407 = vpack.c.b16 %v322, %v321
    %v408 = vpack.c.b16 %v324, %v323
    %v409 = vpack.c.b16 %v326, %v325
    %v410 = vpack.c.b16 %v328, %v327
    %v411 = vpack.c.b16 %v330, %v329
    %v412 = vpack.c.b16 %v332, %v331
    %v413 = vpack.c.b16 %v334, %v333
    %v414 = vpack.c.b16 %v336, %v335
    %v415 = vpack.c.b16 %v338, %v337
    %v416 = vpack.c.b16 %v340, %v339
    %v417 = vpack.c.b16 %v342, %v341
    %v418 = vpack.c.b16 %v344, %v343
    %v419 = vpack.c.b16 %v346, %v345
    %v420 = vpack.c.b16 %v348, %v347
    %v421 = vpack.c.b16 %v350, %v349
    %v422 = vpack.c.b16 %v352, %v351
    %v423 = vpack.c.b16 %v354, %v353
    %v424 = vpack.c.b16 %v356, %v355
    %v425 = vpack.c.b16 %v358, %v357
    %v426 = vpack.c.b16 %v360, %v359
    %v427 = vpack.c.b16 %v362, %v361
    %v428 = vpack.c.b16 %v364, %v363
    %v429 = vpack.c.b16 %v366, %v365
    %v430 = vpack.c.b16 %v368, %v367
    %v431 = vpack.c.b16 %v370, %v369
    %v432 = vpack.c.b16 %v372, %v371
    %v433 = vpack.c.b16 %v374, %v373
    %v434 = vpack.c.b16 %v376, %v375
    %v435 = vpack.c.b16 %v378, %v377
    %v436 = vpack.c.b16 %v380, %v379
    %v437 = vpack.c.b16 %v382, %v381
    %v438 = vpack.c.b16 %v384, %v383
    %v439 = vpack.c.b16 %v386, %v385
    %v440 = vpack.c.b16 %v388, %v387
    %v441 = vpack.c.b16 %v390, %v389
    %v442 = vpack.c.b16 %v392, %v391
    %v443 = vpack.c.b16 %v394, %v393
    %vm493 = vcmask 130048
    %v495 = vsel %vm493, %v93, 0
    %497 = vmatprep.subr.bf16.mxu0 0
    %498 = vmatpush1.bf16.msra.mxu0 %v402
    %499 = vmatprep.subr.bf16.mxu0 0
    %500 = vmatpush1.bf16.msra.mxu0 %v401
    %501 = vmatprep.subr.bf16.mxu0 0
    %502 = vmatpush1.bf16.msra.mxu0 %v400
    %503 = vmatprep.subr.bf16.mxu0 0
    %504 = vmatpush1.bf16.msra.mxu0 %v399
    %505 = vmatprep.subr.bf16.mxu0 0
    %506 = vmatpush1.bf16.msra.mxu0 %v398
    %507 = vmatprep.subr.bf16.mxu0 0
    %508 = vmatpush1.bf16.msra.mxu0 %v397
    %509 = vmatprep.subr.bf16.mxu0 0
    %510 = vmatpush1.bf16.msra.mxu0 %v396
    %511 = vmatprep.subr.bf16.mxu0 0
    %512 = vmatpush1.bf16.msra.mxu0 %v395
    %513 = vmatprep.subr.bf16.mxu0 0
    %514 = vmatpush2.bf16.msra.mxu0 %v410
    %515 = vmatprep.subr.bf16.mxu0 0
    %516 = vmatpush2.bf16.msra.mxu0 %v409
    %517 = vmatprep.subr.bf16.mxu0 0
    %518 = vmatpush2.bf16.msra.mxu0 %v408
    %519 = vmatprep.subr.bf16.mxu0 0
    %520 = vmatpush2.bf16.msra.mxu0 %v407
    %521 = vmatprep.subr.bf16.mxu0 0
    %522 = vmatpush2.bf16.msra.mxu0 %v406
    %523 = vmatprep.subr.bf16.mxu0 0
    %524 = vmatpush2.bf16.msra.mxu0 %v405
    %525 = vmatprep.subr.bf16.mxu0 0
    %526 = vmatpush2.bf16.msra.mxu0 %v404
    %527 = vmatprep.subr.bf16.mxu0 0
    %528 = vmatpush2.bf16.msra.mxu0 %v403
    %529 = vmatprep.mubr.bf16.mxu0 %v88
    %530 = vmatmul.mubr.bf16.gmra.mxu0 %v87
    %v531 = vpop.f32.mrf.mxu0
    %v532 = vadd.f32 %v197, %v531
    %v533 = vpop.f32.mrf.mxu0
    %v534 = vpop.f32.mrf.mxu0
    %v535 = vpop.f32.mrf.mxu0
    %536 = vdwg.mxu0
    %537 = vmatprep.subr.bf16.mxu0 0
    %538 = vmatpush1.bf16.msra.mxu0 %v418
    %539 = vmatprep.subr.bf16.mxu0 0
    %540 = vmatpush1.bf16.msra.mxu0 %v417
    %541 = vmatprep.subr.bf16.mxu0 0
    %542 = vmatpush1.bf16.msra.mxu0 %v416
    %543 = vmatprep.subr.bf16.mxu0 0
    %544 = vmatpush1.bf16.msra.mxu0 %v415
    %545 = vmatprep.subr.bf16.mxu0 0
    %546 = vmatpush1.bf16.msra.mxu0 %v414
    %547 = vmatprep.subr.bf16.mxu0 0
    %548 = vmatpush1.bf16.msra.mxu0 %v413
    %549 = vmatprep.subr.bf16.mxu0 0
    %550 = vmatpush1.bf16.msra.mxu0 %v412
    %551 = vmatprep.subr.bf16.mxu0 0
    %552 = vmatpush1.bf16.msra.mxu0 %v411
    %553 = vmatprep.subr.bf16.mxu0 0
    %554 = vmatpush2.bf16.msra.mxu0 %v426
    %555 = vmatprep.subr.bf16.mxu0 0
    %556 = vmatpush2.bf16.msra.mxu0 %v425
    %557 = vmatprep.subr.bf16.mxu0 0
    %558 = vmatpush2.bf16.msra.mxu0 %v424
    %559 = vmatprep.subr.bf16.mxu0 0
    %560 = vmatpush2.bf16.msra.mxu0 %v423
    %561 = vmatprep.subr.bf16.mxu0 0
    %562 = vmatpush2.bf16.msra.mxu0 %v422
    %563 = vmatprep.subr.bf16.mxu0 0
    %564 = vmatpush2.bf16.msra.mxu0 %v421
    %565 = vmatprep.subr.bf16.mxu0 0
    %566 = vmatpush2.bf16.msra.mxu0 %v420
    %567 = vmatprep.subr.bf16.mxu0 0
    %568 = vmatpush2.bf16.msra.mxu0 %v419
    %569 = vmatprep.mubr.bf16.mxu0 %v90
    %570 = vmatmul.mubr.bf16.gmra.mxu0 %v89
    %v571 = vpop.f32.mrf.mxu0
    %v572 = vadd.f32 %v532, %v571
    %v573 = vpop.f32.mrf.mxu0
    %v574 = vpop.f32.mrf.mxu0
    %v575 = vpop.f32.mrf.mxu0
    %576 = vdwg.mxu0
    %577 = vmatprep.subr.bf16.mxu0 0
    %578 = vmatpush1.bf16.msra.mxu0 %v434
    %579 = vmatprep.subr.bf16.mxu0 0
    %580 = vmatpush1.bf16.msra.mxu0 %v433
    %581 = vmatprep.subr.bf16.mxu0 0
    %582 = vmatpush1.bf16.msra.mxu0 %v432
    %583 = vmatprep.subr.bf16.mxu0 0
    %584 = vmatpush1.bf16.msra.mxu0 %v431
    %585 = vmatprep.subr.bf16.mxu0 0
    %586 = vmatpush1.bf16.msra.mxu0 %v430
    %587 = vmatprep.subr.bf16.mxu0 0
    %588 = vmatpush1.bf16.msra.mxu0 %v429
    %589 = vmatprep.subr.bf16.mxu0 0
    %590 = vmatpush1.bf16.msra.mxu0 %v428
    %591 = vmatprep.subr.bf16.mxu0 0
    %592 = vmatpush1.bf16.msra.mxu0 %v427
    %593 = vmatprep.subr.bf16.mxu0 0
    %594 = vmatpush2.bf16.msra.mxu0 %v442
    %595 = vmatprep.subr.bf16.mxu0 0
    %596 = vmatpush2.bf16.msra.mxu0 %v441
    %597 = vmatprep.subr.bf16.mxu0 0
    %598 = vmatpush2.bf16.msra.mxu0 %v440
    %599 = vmatprep.subr.bf16.mxu0 0
    %600 = vmatpush2.bf16.msra.mxu0 %v439
    %601 = vmatprep.subr.bf16.mxu0 0
    %602 = vmatpush2.bf16.msra.mxu0 %v438
    %603 = vmatprep.subr.bf16.mxu0 0
    %604 = vmatpush2.bf16.msra.mxu0 %v437
    %605 = vmatprep.subr.bf16.mxu0 0
    %606 = vmatpush2.bf16.msra.mxu0 %v436
    %607 = vmatprep.subr.bf16.mxu0 0
    %608 = vmatpush2.bf16.msra.mxu0 %v435
    %609 = vmatprep.mubr.bf16.mxu0 %v92
    %610 = vmatmul.mubr.bf16.gmra.mxu0 %v91
    %v611 = vpop.f32.mrf.mxu0
    %v612 = vadd.f32 %v572, %v611
    %v613 = vpop.f32.mrf.mxu0
    %v614 = vpop.f32.mrf.mxu0
    %v615 = vpop.f32.mrf.mxu0
    %616 = vdwg.mxu0
    %617 = vmatprep.subr.bf16.mxu0 0
    %618 = vmatpush1.bf16.msra.mxu0 0
    %619 = vmatprep.subr.bf16.mxu0 0
    %620 = vmatpush1.bf16.msra.mxu0 0
    %621 = vmatprep.subr.bf16.mxu0 0
    %622 = vmatpush1.bf16.msra.mxu0 0
    %623 = vmatprep.subr.bf16.mxu0 0
    %624 = vmatpush1.bf16.msra.mxu0 0
    %625 = vmatprep.subr.bf16.mxu0 0
    %626 = vmatpush1.bf16.msra.mxu0 0
    %627 = vmatprep.subr.bf16.mxu0 0
    %628 = vmatpush1.bf16.msra.mxu0 0
    %629 = vmatprep.subr.bf16.mxu0 0
    %630 = vmatpush1.bf16.msra.mxu0 0
    %631 = vmatprep.subr.bf16.mxu0 0
    %632 = vmatpush1.bf16.msra.mxu0 %v443
    %633 = vmatprep.subr.bf16.mxu0 0
    %634 = vmatpush2.bf16.msra.mxu0 0
    %635 = vmatprep.subr.bf16.mxu0 0
    %636 = vmatpush2.bf16.msra.mxu0 0
    %637 = vmatprep.subr.bf16.mxu0 0
    %638 = vmatpush2.bf16.msra.mxu0 0
    %639 = vmatprep.subr.bf16.mxu0 0
    %640 = vmatpush2.bf16.msra.mxu0 0
    %641 = vmatprep.subr.bf16.mxu0 0
    %642 = vmatpush2.bf16.msra.mxu0 0
    %643 = vmatprep.subr.bf16.mxu0 0
    %644 = vmatpush2.bf16.msra.mxu0 0
    %645 = vmatprep.subr.bf16.mxu0 0
    %646 = vmatpush2.bf16.msra.mxu0 0
    %647 = vmatprep.subr.bf16.mxu0 0
    %648 = vmatpush2.bf16.msra.mxu0 0
    %649 = vmatprep.mubr.bf16.mxu0 0
    %650 = vmatmul.mubr.bf16.gmra.mxu0 %v495
    %v651 = vpop.f32.mrf.mxu0
    %v652 = vadd.f32 %v612, %v651
    %v653 = vpop.f32.mrf.mxu0
    %v654 = vpop.f32.mrf.mxu0
    %v655 = vpop.f32.mrf.mxu0
    %656 = vdwg.mxu0
    %v657 = vmax.f32 %v652, 0.0
    %v658 = vpack.c.bf16 %v657, %v657
    %v659 = vld [vmem:[#allocation6] sm:$0xf]
    %v660 = vld [vmem:[#allocation6 + $0x4] sm:$0xf]
    %v661 = vld [vmem:[#allocation6 + $0x8] sm:$0xf]
    %v662 = vld [vmem:[#allocation6 + $0xc] sm:$0xf]
    %v663 = vld [vmem:[#allocation6 + $0x10] sm:$0xf]
    %v664 = vld [vmem:[#allocation6 + $0x14] sm:$0xf]
    %v665 = vld [vmem:[#allocation6 + $0x18] sm:$0xf]
    %v666 = vld [vmem:[#allocation6 + $0x1c] sm:$0xf]
    %v667 = vld [vmem:[#allocation6 + $0x20] sm:$0xf]
    %v668 = vld [vmem:[#allocation6 + $0x24] sm:$0xf]
    %v669 = vld [vmem:[#allocation6 + $0x28] sm:$0xf]
    %v670 = vld [vmem:[#allocation6 + $0x2c] sm:$0xf]
    %v671 = vld [vmem:[#allocation6 + $0x30] sm:$0xf]
    %v672 = vld [vmem:[#allocation6 + $0x34] sm:$0xf]
    %v673 = vld [vmem:[#allocation6 + $0x38] sm:$0xf]
    %v674 = vld [vmem:[#allocation6 + $0x3c] sm:$0xf]
    %v675 = vld [vmem:[%s4] sm:$0x1]
    %v677 = vlaneseq
    %v678 = vshrl.u32 %v677, 7
    %v679 = vsub.s32 0, %v678
    %v680 = vrot.slane %v675, %v679
    %v698 = vunpack.c.l.b16 %v659
    %v699 = vunpack.c.l.b16 %v660
    %v700 = vunpack.c.l.b16 %v661
    %v701 = vunpack.c.l.b16 %v662
    %v702 = vunpack.c.l.b16 %v663
    %v703 = vunpack.c.l.b16 %v664
    %v704 = vunpack.c.l.b16 %v665
    %v705 = vunpack.c.l.b16 %v666
    %v706 = vunpack.c.l.b16 %v667
    %v707 = vunpack.c.l.b16 %v668
    %v708 = vunpack.c.l.b16 %v669
    %v709 = vunpack.c.l.b16 %v670
    %v710 = vunpack.c.l.b16 %v671
    %v711 = vunpack.c.l.b16 %v672
    %v712 = vunpack.c.l.b16 %v673
    %v713 = vunpack.c.l.b16 %v674
    %v714 = vpack.c.b16 %v699, %v698
    %v715 = vpack.c.b16 %v701, %v700
    %v716 = vpack.c.b16 %v703, %v702
    %v717 = vpack.c.b16 %v705, %v704
    %v718 = vpack.c.b16 %v707, %v706
    %v719 = vpack.c.b16 %v709, %v708
    %v720 = vpack.c.b16 %v711, %v710
    %v721 = vpack.c.b16 %v713, %v712
    %730 = vmatprep.subr.bf16.mxu0 0
    %731 = vmatpush1.bf16.msra.mxu0 %v721
    %732 = vmatprep.subr.bf16.mxu0 0
    %733 = vmatpush1.bf16.msra.mxu0 %v720
    %734 = vmatprep.subr.bf16.mxu0 0
    %735 = vmatpush1.bf16.msra.mxu0 %v719
    %736 = vmatprep.subr.bf16.mxu0 0
    %737 = vmatpush1.bf16.msra.mxu0 %v718
    %738 = vmatprep.subr.bf16.mxu0 0
    %739 = vmatpush1.bf16.msra.mxu0 %v717
    %740 = vmatprep.subr.bf16.mxu0 0
    %741 = vmatpush1.bf16.msra.mxu0 %v716
    %742 = vmatprep.subr.bf16.mxu0 0
    %743 = vmatpush1.bf16.msra.mxu0 %v715
    %744 = vmatprep.subr.bf16.mxu0 0
    %745 = vmatpush1.bf16.msra.mxu0 %v714
    %746 = vmatprep.subr.bf16.mxu0 0
    %747 = vmatpush2.bf16.msra.mxu0 0
    %748 = vmatprep.subr.bf16.mxu0 0
    %749 = vmatpush2.bf16.msra.mxu0 0
    %750 = vmatprep.subr.bf16.mxu0 0
    %751 = vmatpush2.bf16.msra.mxu0 0
    %752 = vmatprep.subr.bf16.mxu0 0
    %753 = vmatpush2.bf16.msra.mxu0 0
    %754 = vmatprep.subr.bf16.mxu0 0
    %755 = vmatpush2.bf16.msra.mxu0 0
    %756 = vmatprep.subr.bf16.mxu0 0
    %757 = vmatpush2.bf16.msra.mxu0 0
    %758 = vmatprep.subr.bf16.mxu0 0
    %759 = vmatpush2.bf16.msra.mxu0 0
    %760 = vmatprep.subr.bf16.mxu0 0
    %761 = vmatpush2.bf16.msra.mxu0 0
    %762 = vmatprep.mubr.bf16.mxu0 0
    %763 = vmatmul.mubr.bf16.gmra.mxu0 %v658
    %v764 = vpop.f32.mrf.mxu0
    %v765 = vadd.f32 %v680, %v764
    %v766 = vpop.f32.mrf.mxu0
    %v767 = vpop.f32.mrf.mxu0
    %v768 = vpop.f32.mrf.mxu0
    %769 = vdwg.mxu0
    %v770 = vmax.f32 %v765, 0.0
    %v771 = vpack.c.bf16 %v770, %v770
    %v772 = vld [vmem:[#allocation7] sm:$0xf]
    %v773 = vld [vmem:[#allocation7 + $0x4] sm:$0xf]
    %v774 = vld [vmem:[#allocation7 + $0x8] sm:$0xf]
    %v775 = vld [vmem:[#allocation7 + $0xc] sm:$0xf]
    %v776 = vld [vmem:[#allocation7 + $0x10] sm:$0xf]
    %v777 = vld [vmem:[#allocation7 + $0x14] sm:$0xf]
    %v778 = vld [vmem:[#allocation7 + $0x18] sm:$0xf]
    %v779 = vld [vmem:[#allocation7 + $0x1c] sm:$0xf]
    %v780 = vld [vmem:[#allocation7 + $0x20] sm:$0xf]
    %v781 = vld [vmem:[#allocation7 + $0x24] sm:$0xf]
    %v782 = vld [vmem:[#allocation7 + $0x28] sm:$0xf]
    %v783 = vld [vmem:[#allocation7 + $0x2c] sm:$0xf]
    %v784 = vld [vmem:[#allocation7 + $0x30] sm:$0xf]
    %v785 = vld [vmem:[#allocation7 + $0x34] sm:$0xf]
    %v786 = vld [vmem:[#allocation7 + $0x38] sm:$0xf]
    %v787 = vld [vmem:[#allocation7 + $0x3c] sm:$0xf]
    %v788 = vld [vmem:[%s6] sm:$0x1]
    %v790 = vlaneseq
    %v791 = vshrl.u32 %v790, 7
    %v792 = vsub.s32 0, %v791
    %v793 = vrot.slane %v788, %v792
    %v811 = vunpack.c.l.b16 %v772
    %v812 = vunpack.c.l.b16 %v773
    %v813 = vunpack.c.l.b16 %v774
    %v814 = vunpack.c.l.b16 %v775
    %v815 = vunpack.c.l.b16 %v776
    %v816 = vunpack.c.l.b16 %v777
    %v817 = vunpack.c.l.b16 %v778
    %v818 = vunpack.c.l.b16 %v779
    %v819 = vunpack.c.l.b16 %v780
    %v820 = vunpack.c.l.b16 %v781
    %v821 = vunpack.c.l.b16 %v782
    %v822 = vunpack.c.l.b16 %v783
    %v823 = vunpack.c.l.b16 %v784
    %v824 = vunpack.c.l.b16 %v785
    %v825 = vunpack.c.l.b16 %v786
    %v826 = vunpack.c.l.b16 %v787
    %v827 = vpack.c.b16 %v812, %v811
    %v828 = vpack.c.b16 %v814, %v813
    %v829 = vpack.c.b16 %v816, %v815
    %v830 = vpack.c.b16 %v818, %v817
    %v831 = vpack.c.b16 %v820, %v819
    %v832 = vpack.c.b16 %v822, %v821
    %v833 = vpack.c.b16 %v824, %v823
    %v834 = vpack.c.b16 %v826, %v825
    %843 = vmatprep.subr.bf16.mxu0 0
    %844 = vmatpush1.bf16.msra.mxu0 %v834
    %845 = vmatprep.subr.bf16.mxu0 0
    %846 = vmatpush1.bf16.msra.mxu0 %v833
    %847 = vmatprep.subr.bf16.mxu0 0
    %848 = vmatpush1.bf16.msra.mxu0 %v832
    %849 = vmatprep.subr.bf16.mxu0 0
    %850 = vmatpush1.bf16.msra.mxu0 %v831
    %851 = vmatprep.subr.bf16.mxu0 0
    %852 = vmatpush1.bf16.msra.mxu0 %v830
    %853 = vmatprep.subr.bf16.mxu0 0
    %854 = vmatpush1.bf16.msra.mxu0 %v829
    %855 = vmatprep.subr.bf16.mxu0 0
    %856 = vmatpush1.bf16.msra.mxu0 %v828
    %857 = vmatprep.subr.bf16.mxu0 0
    %858 = vmatpush1.bf16.msra.mxu0 %v827
    %859 = vmatprep.subr.bf16.mxu0 0
    %860 = vmatpush2.bf16.msra.mxu0 0
    %861 = vmatprep.subr.bf16.mxu0 0
    %862 = vmatpush2.bf16.msra.mxu0 0
    %863 = vmatprep.subr.bf16.mxu0 0
    %864 = vmatpush2.bf16.msra.mxu0 0
    %865 = vmatprep.subr.bf16.mxu0 0
    %866 = vmatpush2.bf16.msra.mxu0 0
    %867 = vmatprep.subr.bf16.mxu0 0
    %868 = vmatpush2.bf16.msra.mxu0 0
    %869 = vmatprep.subr.bf16.mxu0 0
    %870 = vmatpush2.bf16.msra.mxu0 0
    %871 = vmatprep.subr.bf16.mxu0 0
    %872 = vmatpush2.bf16.msra.mxu0 0
    %873 = vmatprep.subr.bf16.mxu0 0
    %874 = vmatpush2.bf16.msra.mxu0 0
    %875 = vmatprep.mubr.bf16.mxu0 0
    %876 = vmatmul.mubr.bf16.gmra.mxu0 %v771
    %v877 = vpop.f32.mrf.mxu0
    %v878 = vadd.f32 %v793, %v877
    %v879 = vpop.f32.mrf.mxu0
    %v880 = vpop.f32.mrf.mxu0
    %v881 = vpop.f32.mrf.mxu0
    %882 = vdwg.mxu0
    %v883 = vpack.c.bf16 %v878, %v878
    %884 = vst [vmem:[%s7] sm:$0xf] %v883
    // Predicated region
    $region46: #{mlp_mnist_forward.1} parent=1 // pred_check
      _
    $region47: #{mlp_mnist_forward.1} parent=1 // pred_check_branch
      %886 = sbr.rel (0) target = $region49
    $region48: #{mlp_mnist_forward.1} parent=1 // pred_region
      _
    $region49: #{mlp_mnist_forward.1} parent=1 // pred_fallthru
      _
    // Predicated region
    $region50: #{mlp_mnist_forward.1} parent=1 // pred_check
      _
    $region51: #{mlp_mnist_forward.1} parent=1 // pred_check_branch
      %888 = sbr.rel (0) target = $region53
    $region52: #{mlp_mnist_forward.1} parent=1 // pred_region
      _
    $region53: #{mlp_mnist_forward.1} parent=1 // pred_fallthru
      _
    %889 = vsyncpa [#allocation3], 1
    %890 = vsyncpa [#allocation5], 1
    %891 = vsyncpa [#allocation8], 1

</llo_original>
